<compile_context>
chip_gen: v5e
topology: v5e:2x2
jax: 0.10.0
libtpu: 0.0.40
codegen_flags: <defaults>
</compile_context>

<pallas_src>
import functools
import jax
import jax.numpy as jnp
from jax.experimental import pallas as pl
from jax.experimental.pallas import tpu as pltpu

# ------------------------- config (synthetic, deterministic) -------------------------
INPUT_SLICE = {"proprio": (0, 8), "exteroception": (16, 24)}    # -> 16 selected features
INPUT_SIZE = sum(e - s for (s, e) in INPUT_SLICE.values())       # 16
RAW_FEATURES = 24                                                # must cover slice ranges
HIDDEN_TO_PRED_SHAPE = [32, 32]
PRIV_SIZE = 4
SEQ_LENGTH = 8
BATCH = 2
LEAKY_SLOPE = 0.01  # torch.nn.LeakyReLU default negative_slope

H0, H1, P_OUT = HIDDEN_TO_PRED_SHAPE[0], HIDDEN_TO_PRED_SHAPE[1], PRIV_SIZE


def _round_up(n, m):
    return ((n + m - 1) // m) * m


def leaky_relu(x):
    return jnp.where(x > 0, x, LEAKY_SLOPE * x)


# --------------------------- packed-parameter slab layout -----------------------------
# One (SLAB_ROWS, SLAB_W) f32 array holds all weights/biases. Every segment starts on a
# sublane-aligned (multiple-of-8) row so static slices stay layout-friendly.
SLAB_W = max(H0, H1, P_OUT)                          # 32 (lane dim; full-extent block)
_W0_OFF = 0                                          # (RAW_FEATURES, H0), selection folded in
_B0_OFF = _round_up(_W0_OFF + RAW_FEATURES, 8)       # 24
_W1_OFF = _round_up(_B0_OFF + 1, 8)                  # 32
_B1_OFF = _round_up(_W1_OFF + H0, 8)                 # 64
_W2_OFF = _round_up(_B1_OFF + 1, 8)                  # 72   (H1, P_OUT) zero-padded to width 32
_B2_OFF = _round_up(_W2_OFF + H1, 8)                 # 104
SLAB_ROWS = _round_up(_B2_OFF + 1, 8)                # 112


# ------------------------------- Pallas kernel ---------------------------------------
def mlp_kernel(x_ref, slab_ref, o_ref):
    x = x_ref[...]                                           # (rows, RAW_FEATURES)
    w0 = slab_ref[_W0_OFF:_W0_OFF + RAW_FEATURES, :]         # (24, 32) selection folded in
    b0 = slab_ref[_B0_OFF:_B0_OFF + 1, :]                    # (1, 32)
    w1 = slab_ref[_W1_OFF:_W1_OFF + H0, :]                   # (32, 32)
    b1 = slab_ref[_B1_OFF:_B1_OFF + 1, :]                    # (1, 32)
    w2 = slab_ref[_W2_OFF:_W2_OFF + H1, :]                   # (32, 32), cols >= P_OUT are zero
    b2 = slab_ref[_B2_OFF:_B2_OFF + 1, :]                    # (1, 32),  cols >= P_OUT are zero

    h = leaky_relu(jnp.dot(x, w0, preferred_element_type=jnp.float32) + b0)
    h = leaky_relu(jnp.dot(h, w1, preferred_element_type=jnp.float32) + b1)
    out = jnp.dot(h, w2, preferred_element_type=jnp.float32) + b2   # (rows, 32)
    o_ref[...] = out[:, :P_OUT].astype(o_ref.dtype)


# --------------------------------- forward wrapper ------------------------------------
@functools.partial(jax.jit, static_argnames=("row_tile",))
def mlp_forward(x, slab, row_tile=512):
    """x: (batch, seq, raw_features) f32, slab: packed params -> (batch, seq, priv_size)."""
    B, S, D = x.shape
    xs = x.reshape(B * S, D)            # feature-last; rows -> sublanes, features -> lanes
    M = xs.shape[0]

    slab_spec_1 = pl.BlockSpec((SLAB_ROWS, SLAB_W), lambda i: (0, 0))

    if M <= row_tile:
        # Single kernel invocation: one step, one input DMA, one param DMA, one store.
        out = pl.pallas_call(
            mlp_kernel,
            out_shape=jax.ShapeDtypeStruct((M, P_OUT), jnp.float32),
            grid=(1,),
            in_specs=[pl.BlockSpec((M, D), lambda i: (0, 0)), slab_spec_1],
            out_specs=pl.BlockSpec((M, P_OUT), lambda i: (0, 0)),
        )(xs, slab)
    else:
        # Large-batch path: tile rows, keep the (tiny) parameter slab resident.
        Mp = _round_up(M, row_tile)
        if Mp != M:
            xs = jnp.pad(xs, ((0, Mp - M), (0, 0)))
        out = pl.pallas_call(
            mlp_kernel,
            out_shape=jax.ShapeDtypeStruct((Mp, P_OUT), jnp.float32),
            grid=(Mp // row_tile,),
            in_specs=[pl.BlockSpec((row_tile, D), lambda i: (i, 0)), slab_spec_1],
            out_specs=pl.BlockSpec((row_tile, P_OUT), lambda i: (i, 0)),
            compiler_params=pltpu.CompilerParams(
                dimension_semantics=("parallel",)),
        )(xs, slab)
        out = out[:M]

    return out.reshape(B, S, P_OUT)


# ------------------------------- parameter init --------------------------------------
def init_params(key):
    """Deterministic synthetic weights matching modules.MLP layer shapes."""
    dims = [INPUT_SIZE] + HIDDEN_TO_PRED_SHAPE + [PRIV_SIZE]
    init_scale = 1.0 / jnp.sqrt(2.0)
    params = []
    for i in range(len(dims) - 1):
        key, kw = jax.random.split(key)
        w = jax.random.normal(kw, (dims[i], dims[i + 1]), jnp.float32)
        w = w * (init_scale / jnp.sqrt(dims[i]))
        b = jnp.zeros((dims[i + 1],), jnp.float32)
        params += [w, b]
    return tuple(params)


def pack_params(params):
    """Pack (w0,b0,w1,b1,w2,b2) into one VMEM-friendly slab; fold input_selection into w0."""
    w0, b0, w1, b1, w2, b2 = params
    # Scatter w0 rows into raw-feature positions (unselected feature rows stay zero).
    w0p = jnp.zeros((RAW_FEATURES, H0), jnp.float32)
    off = 0
    for (s, e) in INPUT_SLICE.values():
        w0p = w0p.at[s:e, :].set(w0[off:off + (e - s), :])
        off += e - s
    slab = jnp.zeros((SLAB_ROWS, SLAB_W), jnp.float32)
    slab = slab.at[_W0_OFF:_W0_OFF + RAW_FEATURES, :H0].set(w0p)
    slab = slab.at[_B0_OFF, :H0].set(b0)
    slab = slab.at[_W1_OFF:_W1_OFF + H0, :H1].set(w1)
    slab = slab.at[_B1_OFF, :H1].set(b1)
    slab = slab.at[_W2_OFF:_W2_OFF + H1, :P_OUT].set(w2)
    slab = slab.at[_B2_OFF, :P_OUT].set(b2)
    return slab


# ------------------------------- reference (pure JAX) ---------------------------------
def mlp_ref(x, params):
    sel = jnp.concatenate([x[..., s:e] for (s, e) in INPUT_SLICE.values()], axis=-1)
    w0, b0, w1, b1, w2, b2 = params
    h = leaky_relu(sel @ w0 + b0)
    h = leaky_relu(h @ w1 + b1)
    return h @ w2 + b2


# ---------------------------------------- main ----------------------------------------
if __name__ == "__main__":
    key = jax.random.PRNGKey(0)
    key, kx, kp = jax.random.split(key, 3)

    x = jax.random.normal(kx, (BATCH, SEQ_LENGTH, RAW_FEATURES), jnp.float32)
    params = init_params(kp)
    slab = pack_params(params)            # packed once; reused across calls

    out = mlp_forward(x, slab)
    out = jax.block_until_ready(out)

    ref = mlp_ref(x, params)
    assert out.shape == (BATCH, SEQ_LENGTH, PRIV_SIZE)
    assert jnp.allclose(out, ref, atol=1e-5, rtol=1e-5), "mismatch vs reference"

    print("KERNEL_OK")
</pallas_src>

<mosaic_0001>
module attributes {stable_mosaic.version = 11 : i64} {
  func.func @mlp_kernel(%arg0: i32, %arg1: memref<16x24xf32, #tpu.memory_space<vmem>>, %arg2: memref<112x32xf32, #tpu.memory_space<vmem>>, %arg3: memref<16x4xf32, #tpu.memory_space<vmem>>) attributes {dimension_semantics = [#tpu.dimension_semantics<arbitrary>], iteration_bounds = array<i64: 1>, scalar_prefetch = 0 : i64, scratch_operands = 0 : i64, tpu.core_type = #tpu.core_type<tc>, window_params = [{pipeline_mode = #tpu.pipeline_mode<synchronous>, transform_indices = @transform_0, window_bounds = array<i64: 16, 24>}, {pipeline_mode = #tpu.pipeline_mode<synchronous>, transform_indices = @transform_1, window_bounds = array<i64: 112, 32>}, {pipeline_mode = #tpu.pipeline_mode<synchronous>, transform_indices = @transform_2, window_bounds = array<i64: 16, 4>}]} {
    %c0 = arith.constant 0 : index
    %c0_0 = arith.constant 0 : index
    %0 = vector.load %arg1[%c0, %c0_0] : memref<16x24xf32, #tpu.memory_space<vmem>>, vector<16x24xf32>
    %c0_1 = arith.constant 0 : index
    %c0_2 = arith.constant 0 : index
    %1 = vector.load %arg2[%c0_1, %c0_2] : memref<112x32xf32, #tpu.memory_space<vmem>>, vector<24x32xf32>
    %c24 = arith.constant 24 : index
    %c0_3 = arith.constant 0 : index
    %2 = vector.load %arg2[%c24, %c0_3] : memref<112x32xf32, #tpu.memory_space<vmem>>, vector<1x32xf32>
    %c32 = arith.constant 32 : index
    %c0_4 = arith.constant 0 : index
    %3 = vector.load %arg2[%c32, %c0_4] : memref<112x32xf32, #tpu.memory_space<vmem>>, vector<32x32xf32>
    %c64 = arith.constant 64 : index
    %c0_5 = arith.constant 0 : index
    %4 = vector.load %arg2[%c64, %c0_5] : memref<112x32xf32, #tpu.memory_space<vmem>>, vector<1x32xf32>
    %c72 = arith.constant 72 : index
    %c0_6 = arith.constant 0 : index
    %5 = vector.load %arg2[%c72, %c0_6] : memref<112x32xf32, #tpu.memory_space<vmem>>, vector<32x32xf32>
    %c104 = arith.constant 104 : index
    %c0_7 = arith.constant 0 : index
    %6 = vector.load %arg2[%c104, %c0_7] : memref<112x32xf32, #tpu.memory_space<vmem>>, vector<1x32xf32>
    %cst = arith.constant dense<0.000000e+00> : vector<16x32xf32>
    %7 = tpu.matmul %0, %1, %cst {dimension_numbers = #tpu.dot_dimension_numbers<[1], [0], [0], [1], [0, 0, 1, 1], [], []>} : vector<16x24xf32>, vector<24x32xf32>, vector<16x32xf32> -> vector<16x32xf32>
    %8 = vector.broadcast %2 : vector<1x32xf32> to vector<16x32xf32>
    %9 = arith.addf %7, %8 : vector<16x32xf32>
    %cst_8 = arith.constant 0.000000e+00 : f32
    %10 = vector.broadcast %cst_8 : f32 to vector<16x32xf32>
    %11 = arith.cmpf ogt, %9, %10 : vector<16x32xf32>
    %cst_9 = arith.constant 0.00999999977 : f32
    %12 = vector.broadcast %cst_9 : f32 to vector<16x32xf32>
    %13 = arith.mulf %12, %9 : vector<16x32xf32>
    %14 = arith.select %11, %9, %13 : vector<16x32xi1>, vector<16x32xf32>
    %cst_10 = arith.constant dense<0.000000e+00> : vector<16x32xf32>
    %15 = tpu.matmul %14, %3, %cst_10 {dimension_numbers = #tpu.dot_dimension_numbers<[1], [0], [0], [1], [0, 0, 1, 1], [], []>} : vector<16x32xf32>, vector<32x32xf32>, vector<16x32xf32> -> vector<16x32xf32>
    %16 = vector.broadcast %4 : vector<1x32xf32> to vector<16x32xf32>
    %17 = arith.addf %15, %16 : vector<16x32xf32>
    %cst_11 = arith.constant 0.000000e+00 : f32
    %18 = vector.broadcast %cst_11 : f32 to vector<16x32xf32>
    %19 = arith.cmpf ogt, %17, %18 : vector<16x32xf32>
    %cst_12 = arith.constant 0.00999999977 : f32
    %20 = vector.broadcast %cst_12 : f32 to vector<16x32xf32>
    %21 = arith.mulf %20, %17 : vector<16x32xf32>
    %22 = arith.select %19, %17, %21 : vector<16x32xi1>, vector<16x32xf32>
    %cst_13 = arith.constant dense<0.000000e+00> : vector<16x32xf32>
    %23 = tpu.matmul %22, %5, %cst_13 {dimension_numbers = #tpu.dot_dimension_numbers<[1], [0], [0], [1], [0, 0, 1, 1], [], []>} : vector<16x32xf32>, vector<32x32xf32>, vector<16x32xf32> -> vector<16x32xf32>
    %24 = vector.broadcast %6 : vector<1x32xf32> to vector<16x32xf32>
    %25 = arith.addf %23, %24 : vector<16x32xf32>
    %26 = vector.extract_strided_slice %25 {offsets = [0, 0], sizes = [16, 4], strides = [1, 1]} : vector<16x32xf32> to vector<16x4xf32>
    %c0_14 = arith.constant 0 : index
    %c0_15 = arith.constant 0 : index
    %27 = vector.load %arg3[%c0_14, %c0_15] : memref<16x4xf32, #tpu.memory_space<vmem>>, vector<16x4xf32>
    tpu.vector_store %arg3[%c0_14, %c0_15], %26 {strides = array<i32>} : memref<16x4xf32, #tpu.memory_space<vmem>>, vector<16x4xf32>,
    return
  }
  func.func @transform_0(%arg0: i32) -> (i32, i32) {
    %c0_i32 = arith.constant 0 : i32
    %c0_i32_0 = arith.constant 0 : i32
    %c0_i32_1 = arith.constant 0 : i32
    return %c0_i32, %c0_i32_0 : i32, i32
  }
  func.func @transform_1(%arg0: i32) -> (i32, i32) {
    %c0_i32 = arith.constant 0 : i32
    %c0_i32_0 = arith.constant 0 : i32
    %c0_i32_1 = arith.constant 0 : i32
    return %c0_i32, %c0_i32_0 : i32, i32
  }
  func.func @transform_2(%arg0: i32) -> (i32, i32) {
    %c0_i32 = arith.constant 0 : i32
    %c0_i32_0 = arith.constant 0 : i32
    %c0_i32_1 = arith.constant 0 : i32
    return %c0_i32, %c0_i32_0 : i32, i32
  }
}

</mosaic_0001>

<llo_original>
// kernel: mlp_forward.1
$region0: #{mlp_forward.1}
  #allocation0 [shape = 'u32[]', space=smem, size = 0x4, offset = 0x4, fixed_abs, tag = 'smem constant byte address 0x4 - core index']
  #allocation1 [shape = 'u32[72,128]{1,0:T(1,128)}', space=vmem, size = 0x9000, scoped, tag = 'internal scratch']
  %s0 = inlined_call_operand.vmem [shape: f32[16,24], index: 0, kind: input, shape index: {}]
  %s1 = inlined_call_operand.vmem [shape: f32[112,32], index: 1, kind: input, shape index: {}]
  %s2 = inlined_call_operand.vmem [shape: f32[16,4], index: 2, kind: output, shape index: {}]
  %s3 = sld [smem:[#allocation0]]
  $region18: #{mlp_forward.1} parent=0
    _
  %s5 = ssub.s32 1, %s3
  %s6 = scalar_select 0, %s5, %s3
  // Predicated region
  $region2: #{mlp_forward.1} parent=0 // pred_check
    _
  $region3: #{mlp_forward.1} parent=0 // pred_check_branch
    %8 = sbr.rel (0) target = $region5
  $region4: #{mlp_forward.1} parent=0 // pred_region
    _
  $region5: #{mlp_forward.1} parent=0 // pred_fallthru
    _
  // Predicated region
  $region6: #{mlp_forward.1} parent=0 // pred_check
    _
  $region7: #{mlp_forward.1} parent=0 // pred_check_branch
    %10 = sbr.rel (0) target = $region9
  $region8: #{mlp_forward.1} parent=0 // pred_region
    _
  $region9: #{mlp_forward.1} parent=0 // pred_fallthru
    _
  %v11 = vld [vmem:[%s0] sm:$0xff]
  %v12 = vld [vmem:[%s0 + $0x8] sm:$0xff]
  %v13 = vld [vmem:[%s1] sm:$0xff]
  %v14 = vld [vmem:[%s1 + $0x8] sm:$0xff]
  %v15 = vld [vmem:[%s1 + $0x10] sm:$0xff]
  %v16 = vld [vmem:[%s1 + $0x18] sm:$0x1]
  %v17 = vld [vmem:[%s1 + $0x20] sm:$0xff]
  %v18 = vld [vmem:[%s1 + $0x28] sm:$0xff]
  %v19 = vld [vmem:[%s1 + $0x30] sm:$0xff]
  %v20 = vld [vmem:[%s1 + $0x38] sm:$0xff]
  %v21 = vld [vmem:[%s1 + $0x40] sm:$0x1]
  %v22 = vld [vmem:[%s1 + $0x48] sm:$0xff]
  %v23 = vld [vmem:[%s1 + $0x50] sm:$0xff]
  %v24 = vld [vmem:[%s1 + $0x58] sm:$0xff]
  %v25 = vld [vmem:[%s1 + $0x60] sm:$0xff]
  %v26 = vld [vmem:[%s1 + $0x68] sm:$0x1]
  %v27 = vperm.slane %v16, 0
  %vm28 = vcmask 195584
  %v30 = vsel %vm28, %v11, 0
  %v33 = vsel %vm28, %v12, 0
  %35 = vmatpush.msra.mxu0 0.0
  %36 = vmatpush.msra.mxu0 0.0
  %37 = vmatpush.msra.mxu0 0.0
  %38 = vmatpush.msra.mxu0 0.0
  %39 = vmatpush.msra.mxu0 0.0
  %40 = vmatpush.msra.mxu0 0.0
  %41 = vmatpush.msra.mxu0 0.0
  %42 = vmatpush.msra.mxu0 0.0
  %43 = vmatpush.msra.mxu0 0.0
  %44 = vmatpush.msra.mxu0 0.0
  %45 = vmatpush.msra.mxu0 0.0
  %46 = vmatpush.msra.mxu0 0.0
  %47 = vmatpush.msra.mxu0 0.0
  %48 = vmatpush.msra.mxu0 %v15
  %49 = vmatpush.msra.mxu0 %v14
  %50 = vmatpush.msra.mxu0 %v13
  %51 = vmatmul.f32.gmra.mxu0 %v30
  %v52 = vpop.f32.mrf.mxu0
  %v53 = vadd.f32 %v27, %v52
  %54 = vmatmul.f32.gmra.mxu0 %v33
  %v55 = vpop.f32.mrf.mxu0
  %v56 = vadd.f32 %v27, %v55
  %57 = vdwg.mxu0
  %vm58 = vcmp.gt.f32.partialorder %v53, 0.0
  %vm59 = vcmp.gt.f32.partialorder %v56, 0.0
  %v60 = vmul.f32 %v53, 0.01
  %v61 = vmul.f32 %v56, 0.01
  %v62 = vsel %vm58, %v53, %v60
  %v63 = vsel %vm59, %v56, %v61
  %v64 = vperm.slane %v21, 0
  %vm65 = vcmask 261120
  %v67 = vsel %vm65, %v62, 0
  %v70 = vsel %vm65, %v63, 0
  %72 = vmatpush.msra.mxu0 0.0
  %73 = vmatpush.msra.mxu0 0.0
  %74 = vmatpush.msra.mxu0 0.0
  %75 = vmatpush.msra.mxu0 0.0
  %76 = vmatpush.msra.mxu0 0.0
  %77 = vmatpush.msra.mxu0 0.0
  %78 = vmatpush.msra.mxu0 0.0
  %79 = vmatpush.msra.mxu0 0.0
  %80 = vmatpush.msra.mxu0 0.0
  %81 = vmatpush.msra.mxu0 0.0
  %82 = vmatpush.msra.mxu0 0.0
  %83 = vmatpush.msra.mxu0 0.0
  %84 = vmatpush.msra.mxu0 %v20
  %85 = vmatpush.msra.mxu0 %v19
  %86 = vmatpush.msra.mxu0 %v18
  %87 = vmatpush.msra.mxu0 %v17
  %88 = vmatmul.f32.gmra.mxu0 %v67
  %v89 = vpop.f32.mrf.mxu0
  %v90 = vadd.f32 %v64, %v89
  %91 = vmatmul.f32.gmra.mxu0 %v70
  %v92 = vpop.f32.mrf.mxu0
  %v93 = vadd.f32 %v64, %v92
  %94 = vdwg.mxu0
  %vm95 = vcmp.gt.f32.partialorder %v90, 0.0
  %vm96 = vcmp.gt.f32.partialorder %v93, 0.0
  %v97 = vmul.f32 %v90, 0.01
  %v98 = vmul.f32 %v93, 0.01
  %v99 = vsel %vm95, %v90, %v97
  %v100 = vsel %vm96, %v93, %v98
  %v101 = vperm.slane %v26, 0
  %v103 = vsel %vm65, %v99, 0
  %v106 = vsel %vm65, %v100, 0
  %108 = vmatpush.msra.mxu0 0.0
  %109 = vmatpush.msra.mxu0 0.0
  %110 = vmatpush.msra.mxu0 0.0
  %111 = vmatpush.msra.mxu0 0.0
  %112 = vmatpush.msra.mxu0 0.0
  %113 = vmatpush.msra.mxu0 0.0
  %114 = vmatpush.msra.mxu0 0.0
  %115 = vmatpush.msra.mxu0 0.0
  %116 = vmatpush.msra.mxu0 0.0
  %117 = vmatpush.msra.mxu0 0.0
  %118 = vmatpush.msra.mxu0 0.0
  %119 = vmatpush.msra.mxu0 0.0
  %120 = vmatpush.msra.mxu0 %v25
  %121 = vmatpush.msra.mxu0 %v24
  %122 = vmatpush.msra.mxu0 %v23
  %123 = vmatpush.msra.mxu0 %v22
  %124 = vmatmul.f32.gmra.mxu0 %v103
  %v125 = vpop.f32.mrf.mxu0
  %v126 = vadd.f32 %v101, %v125
  %127 = vmatmul.f32.gmra.mxu0 %v106
  %v128 = vpop.f32.mrf.mxu0
  %v129 = vadd.f32 %v101, %v128
  %130 = vdwg.mxu0
  %vm131 = vcmask 31744
  %132 = vst.msk [vmem:[%s2] sm:$0xff] %vm131, %v126
  %133 = vst.msk [vmem:[%s2 + $0x8] sm:$0xff] %vm131, %v129
  // Predicated region
  $region10: #{mlp_forward.1} parent=0 // pred_check
    _
  $region11: #{mlp_forward.1} parent=0 // pred_check_branch
    %135 = sbr.rel (0) target = $region13
  $region12: #{mlp_forward.1} parent=0 // pred_region
    _
  $region13: #{mlp_forward.1} parent=0 // pred_fallthru
    _
  // Predicated region
  $region14: #{mlp_forward.1} parent=0 // pred_check
    _
  $region15: #{mlp_forward.1} parent=0 // pred_check_branch
    %137 = sbr.rel (0) target = $region17
  $region16: #{mlp_forward.1} parent=0 // pred_region
    _
  $region17: #{mlp_forward.1} parent=0 // pred_fallthru
    _

</llo_original>
